<compile_context>
chip_gen: v6e
topology: v6e:2x2x1
jax: 0.10.0
libtpu: 0.0.40
codegen_flags: <defaults>
</compile_context>

<pallas_src>
import functools

import jax
import jax.numpy as jnp
from jax import lax
from jax.experimental import pallas as pl
from jax.experimental.pallas import tpu as pltpu


# --------------------------------------------------------------------------
# Kernel
# --------------------------------------------------------------------------
def _mlp_head_kernel(x_ref, w1_ref, b1_ref, gamma_ref, beta_ref, w2_ref, b2_ref,
                     out_ref, acc_ref, *, inv_hw):
    """x_ref: (TB, C, THW) tile.  acc_ref: (TB, C) f32 pooling accumulator."""
    hw_step = pl.program_id(1)

    # --- init pooling accumulator at the first spatial tile of this batch tile ---
    @pl.when(hw_step == 0)
    def _():
        acc_ref[...] = jnp.zeros_like(acc_ref)

    # --- pooling partial sum ---------------------------------------------------
    xt = x_ref[...]                                        # (TB, C, THW)
    thw = xt.shape[-1]
    if thw % 128 == 0 and thw > 128:
        # VPU-only accumulation of the 128-wide lane chunks (pure VALU adds),
        # then a single cross-lane XLU reduce per grid step.  Keeps the
        # per-loaded-vreg XLU work at 1/(THW/128) of a naive sum(axis=-1).
        chunks = [xt[..., j * 128:(j + 1) * 128].astype(jnp.float32)
                  for j in range(thw // 128)]
        while len(chunks) > 1:                             # balanced add tree
            nxt = [chunks[i] + chunks[i + 1] for i in range(0, len(chunks) - 1, 2)]
            if len(chunks) % 2:
                nxt.append(chunks[-1])
            chunks = nxt
        acc_ref[...] += jnp.sum(chunks[0], axis=-1)
    else:
        acc_ref[...] += jnp.sum(xt.astype(jnp.float32), axis=-1)

    # --- finalize: pool -> fc1 -> GELU -> LayerNorm -> fc2 (once per batch tile) ---
    @pl.when(hw_step == pl.num_programs(1) - 1)
    def _():
        pooled = acc_ref[...] * jnp.float32(inv_hw)        # (TB, C) f32

        # fc1: Linear(C -> hidden); feed MXU in the weights' native dtype.
        w1 = w1_ref[...]
        lhs1 = pooled if w1.dtype == jnp.float32 else pooled.astype(w1.dtype)
        h = jnp.dot(lhs1, w1, preferred_element_type=jnp.float32)
        h = h + b1_ref[...].astype(jnp.float32)            # (TB, hidden)

        # GELU (exact erf form, matching torch.nn.GELU default)
        h = 0.5 * h * (1.0 + lax.erf(h * jnp.float32(0.7071067811865476)))

        # LayerNorm(hidden, eps=1e-6), biased variance (PyTorch semantics)
        mu = jnp.mean(h, axis=-1, keepdims=True)
        var = jnp.mean((h - mu) * (h - mu), axis=-1, keepdims=True)
        hn = (h - mu) * lax.rsqrt(var + jnp.float32(1e-6))
        hn = hn * gamma_ref[...].astype(jnp.float32) + beta_ref[...].astype(jnp.float32)

        # Dropout(p=0.0) is the identity at inference -> nothing to do.

        # fc2: Linear(hidden -> num_classes_padded); padded columns are zero.
        w2 = w2_ref[...]
        lhs2 = hn if w2.dtype == jnp.float32 else hn.astype(w2.dtype)
        out = jnp.dot(lhs2, w2, preferred_element_type=jnp.float32)
        out = out + b2_ref[...].astype(jnp.float32)        # (TB, NCP)
        out_ref[...] = out.astype(out_ref.dtype)


# --------------------------------------------------------------------------
# Tiling / VMEM budgeting
# --------------------------------------------------------------------------
def _vmem_capacity_bytes():
    """Per-core VMEM capacity; conservative 64 MiB fallback (v7x-sized)."""
    try:
        info = pltpu.get_tpu_info()
        cap = int(getattr(info, "vmem_capacity_bytes", 0) or 0)
        if cap > 0:
            return cap
    except Exception:
        pass
    return 64 * 1024 * 1024


def _spatial_tiles(hw):
    """Full extent first (contiguous per-(b,c) row DMA), then the largest
    lane-aligned divisors of H*W, descending."""
    cands = [hw]
    t = (hw // 128) * 128
    while t >= 128:
        if t != hw and hw % t == 0:
            cands.append(t)
        t -= 128
    return cands


def _batch_tiles(b, prefer_multi):
    """Legal batch tiles (multiples of 8 dividing b, capped at 256, plus b
    itself).  prefer_multi orders >=2-tile options first (v7x megacore)."""
    mults = [t for t in range(8, min(b, 256) + 1, 8) if b % t == 0]
    mults.sort(reverse=True)
    if prefer_multi:
        order = [t for t in mults if b // t >= 2] + [b]
    else:
        order = [b] + mults
    seen, out = set(), []
    for t in order:
        if t not in seen:
            seen.add(t)
            out.append(t)
    return out


def _select_tiling(B, C, HW, x_itemsize, out_itemsize, ncp, weight_bytes,
                   vmem_cap, stream_budget_bytes=None):
    """Pick (B_pad, TB, THW) and the per-generation VMEM cap."""
    gen_cap = min(int(vmem_cap * 0.85), 100 * 1024 * 1024)   # ~54 MiB v7x, 100 MiB v5e/v6e
    if stream_budget_bytes is None:
        stream_budget = max(gen_cap - weight_bytes - (2 << 20), 2 << 20)
    else:
        stream_budget = int(stream_budget_bytes)              # test override
    two_tc = vmem_cap <= 64 * 1024 * 1024                     # v7x-class part

    def fits(tb, thw):
        x_tile = tb * C * thw * x_itemsize
        out_tile = tb * ncp * out_itemsize
        acc = tb * C * 4
        return 2 * x_tile + 2 * out_tile + acc <= stream_budget

    def search(b):
        tb_order = _batch_tiles(b, prefer_multi=(two_tc and b >= 16))
        for thw in _spatial_tiles(HW):
            for tb in tb_order:
                if fits(tb, thw):
                    return tb, thw
        return None

    b_pad, found = B, search(B)
    if found is None and B > 8 and B % 8 != 0:
        b_pad = ((B + 7) // 8) * 8     # pad batch so an 8-multiple tile exists
        found = search(b_pad)
    if found is None:                  # last resort: smallest legal tiles
        found = (_batch_tiles(b_pad, False)[-1], _spatial_tiles(HW)[-1])
    tb, thw = found
    return b_pad, tb, thw, gen_cap


# --------------------------------------------------------------------------
# Wrapper
# --------------------------------------------------------------------------
def pad_fc2(params):
    """Pre-pad fc2 weights/bias to a lane multiple ONCE (outside the repeated
    inference hot path).  mlp_classifier_head also pads lazily if needed."""
    w2, b2 = params["w2"], params["b2"]
    nc = w2.shape[1]
    ncp = max(128, ((nc + 127) // 128) * 128)
    if ncp != nc:
        params = dict(params,
                      w2=jnp.pad(w2, ((0, 0), (0, ncp - nc))),
                      b2=jnp.pad(b2, ((0, 0), (0, ncp - nc))))
    return params


def mlp_classifier_head(x_nchw, params, *, num_classes=None,
                        stream_budget_bytes=None):
    """x_nchw: (B, C, H, W).  params: dict of weights (see init_params).
    num_classes: real class count (needed if params were pre-padded)."""
    B, C, H, W = x_nchw.shape
    HW = H * W
    w1, b1 = params["w1"], params["b1"]
    gamma, beta = params["gamma"], params["beta"]
    w2, b2 = params["w2"], params["b2"]
    hidden = w1.shape[1]

    nc_real = int(num_classes) if num_classes is not None else int(w2.shape[1])
    ncp = max(128, pl.cdiv(w2.shape[1], 128) * 128)
    if w2.shape[1] != ncp:     # lazy pad (prefer pad_fc2 once up front)
        w2 = jnp.pad(w2, ((0, 0), (0, ncp - w2.shape[1])))
        b2 = jnp.pad(b2, ((0, 0), (0, ncp - b2.shape[1])))

    # Free layout change: NCHW -> (B, C, H*W); pool over the lane axis in-kernel
    # so the dominant x stream is read from HBM exactly once, no transpose.
    x = x_nchw.reshape(B, C, HW)

    x_itemsize = jnp.dtype(x.dtype).itemsize
    out_dtype = x_nchw.dtype
    out_itemsize = jnp.dtype(out_dtype).itemsize
    weight_bytes = sum(int(a.size) * jnp.dtype(a.dtype).itemsize
                       for a in (w1, b1, gamma, beta, w2, b2))

    vmem_cap = _vmem_capacity_bytes()
    B_pad, TB, THW, gen_cap = _select_tiling(
        B, C, HW, x_itemsize, out_itemsize, ncp, weight_bytes, vmem_cap,
        stream_budget_bytes=stream_budget_bytes)

    if B_pad != B:
        x = jnp.pad(x, ((0, B_pad - B), (0, 0), (0, 0)))

    grid = (B_pad // TB, HW // THW)

    # Derived VMEM limit: weights (single-buffered) + 2x streamed x tile +
    # 2x out tile + pooling accumulator + headroom, clamped per generation.
    x_tile_bytes = TB * C * THW * x_itemsize
    out_tile_bytes = TB * ncp * out_itemsize
    acc_bytes = TB * C * 4
    vmem_limit = weight_bytes + 2 * x_tile_bytes + 2 * out_tile_bytes + acc_bytes + (4 << 20)
    vmem_limit = int(max(32 << 20, min(vmem_limit, gen_cap)))

    flops = (2 * B_pad * C * HW            # pooling adds
             + 2 * B_pad * C * hidden      # fc1
             + 2 * B_pad * hidden * ncp    # fc2
             + 12 * B_pad * hidden)        # GELU + LayerNorm elementwise
    cost = pl.CostEstimate(
        flops=int(flops), transcendentals=int(B_pad * hidden),
        bytes_accessed=int(B_pad * C * HW * x_itemsize + weight_bytes
                           + B_pad * ncp * out_itemsize))

    def _resident(shape):
        # Constant-index weight blocks: fetched once, single-buffered (default
        # double-buffering would double their VMEM footprint for no benefit).
        return pl.BlockSpec(shape, lambda bi, hwi: (0,) * len(shape),
                            pipeline_mode=pl.Buffered(1))

    kernel = functools.partial(_mlp_head_kernel, inv_hw=1.0 / float(HW))

    out_padded = pl.pallas_call(
        kernel,
        out_shape=jax.ShapeDtypeStruct((B_pad, ncp), out_dtype),
        grid=grid,
        in_specs=[
            pl.BlockSpec((TB, C, THW), lambda bi, hwi: (bi, 0, hwi)),  # x (streamed)
            _resident((C, hidden)),        # w1
            _resident((1, hidden)),        # b1
            _resident((1, hidden)),        # ln gamma
            _resident((1, hidden)),        # ln beta
            _resident((hidden, ncp)),      # w2 (lane-padded)
            _resident((1, ncp)),           # b2 (lane-padded)
        ],
        out_specs=pl.BlockSpec((TB, ncp), lambda bi, hwi: (bi, 0)),
        scratch_shapes=[pltpu.VMEM((TB, C), jnp.float32)],             # pool accumulator
        compiler_params=pltpu.CompilerParams(
            dimension_semantics=("parallel", "arbitrary"),
            vmem_limit_bytes=vmem_limit),
        cost_estimate=cost,
    )(x, w1, b1, gamma, beta, w2, b2)

    return out_padded[:B, :nc_real]


# --------------------------------------------------------------------------
# Params, reference, checks
# --------------------------------------------------------------------------
def init_params(key, in_features, num_classes, mlp_ratio=3, param_dtype=jnp.float32):
    hidden = int(mlp_ratio * in_features)
    k1, k2, k3, k4 = jax.random.split(key, 4)
    w1 = (jax.random.normal(k1, (in_features, hidden), jnp.float32) * 0.05).astype(param_dtype)
    b1 = (jax.random.normal(k2, (1, hidden), jnp.float32) * 0.01).astype(param_dtype)
    gamma = jnp.ones((1, hidden), param_dtype)
    beta = jnp.zeros((1, hidden), param_dtype)
    w2 = (jax.random.normal(k3, (hidden, num_classes), jnp.float32) * 0.05).astype(param_dtype)
    b2 = (jax.random.normal(k4, (1, num_classes), jnp.float32) * 0.01).astype(param_dtype)
    return dict(w1=w1, b1=b1, gamma=gamma, beta=beta, w2=w2, b2=b2)


def _reference(x_nchw, p):
    """Pure-JAX reference mirroring the PyTorch forward (native-dtype matmuls)."""
    pooled = jnp.mean(x_nchw.astype(jnp.float32), axis=(2, 3))           # (B, C)
    w1, w2 = p["w1"], p["w2"]
    lhs1 = pooled if w1.dtype == jnp.float32 else pooled.astype(w1.dtype)
    h = jnp.dot(lhs1, w1, preferred_element_type=jnp.float32) + p["b1"].astype(jnp.float32)
    h = 0.5 * h * (1.0 + lax.erf(h * jnp.float32(0.7071067811865476)))
    mu = jnp.mean(h, axis=-1, keepdims=True)
    var = jnp.mean((h - mu) ** 2, axis=-1, keepdims=True)
    h = (h - mu) * lax.rsqrt(var + jnp.float32(1e-6))
    h = h * p["gamma"].astype(jnp.float32) + p["beta"].astype(jnp.float32)
    lhs2 = h if w2.dtype == jnp.float32 else h.astype(w2.dtype)
    return jnp.dot(lhs2, w2, preferred_element_type=jnp.float32) + p["b2"].astype(jnp.float32)


def _check(key, B, C, H, W, num_classes, *, param_dtype=jnp.float32, prepad=False,
           stream_budget_bytes=None, atol=1e-4, rtol=1e-4):
    kx, kp = jax.random.split(key)
    x = jax.random.normal(kx, (B, C, H, W), jnp.float32)
    params = init_params(kp, in_features=C, num_classes=num_classes,
                         mlp_ratio=3, param_dtype=param_dtype)
    ref = _reference(x, params)
    run_params = pad_fc2(params) if prepad else params
    out = jax.block_until_ready(
        mlp_classifier_head(x, run_params, num_classes=num_classes,
                            stream_budget_bytes=stream_budget_bytes))
    assert out.shape == (B, num_classes), (out.shape, (B, num_classes))
    err = jnp.max(jnp.abs(out - ref))
    assert jnp.allclose(out, ref, atol=atol, rtol=rtol), f"mismatch vs reference (max abs err {err})"


if __name__ == "__main__":
    key = jax.random.PRNGKey(0)
    k1, k2, k3 = jax.random.split(key, 3)

    # Small shapes implied by the module: single-tile fast path, pre-padded fc2.
    _check(k1, B=2, C=4, H=16, W=16, num_classes=10, prepad=True)

    # Multi-tile path: a tight stream budget forces batch + spatial tiling and
    # exercises the pooling-accumulator init/finalize across grid steps.
    _check(k2, B=16, C=8, H=32, W=32, num_classes=10,
           stream_budget_bytes=256 * 1024)

    # bf16 weights: MXU-native operands with f32 accumulation (looser tolerance).
    _check(k3, B=4, C=8, H=8, W=8, num_classes=16, param_dtype=jnp.bfloat16,
           prepad=True, atol=5e-2, rtol=5e-2)

    print("KERNEL_OK")
</pallas_src>

<mosaic_0001>
module attributes {stable_mosaic.version = 11 : i64} {
  func.func @_mlp_head_kernel(%arg0: i32, %arg1: i32, %arg2: memref<2x4x256xf32, #tpu.memory_space<vmem>>, %arg3: memref<4x12xf32, #tpu.memory_space<vmem>>, %arg4: memref<1x12xf32, #tpu.memory_space<vmem>>, %arg5: memref<1x12xf32, #tpu.memory_space<vmem>>, %arg6: memref<1x12xf32, #tpu.memory_space<vmem>>, %arg7: memref<12x128xf32, #tpu.memory_space<vmem>>, %arg8: memref<1x128xf32, #tpu.memory_space<vmem>>, %arg9: memref<2x128xf32, #tpu.memory_space<vmem>>, %arg10: memref<2x4xf32, #tpu.memory_space<vmem>>) attributes {dimension_semantics = [#tpu.dimension_semantics<parallel>, #tpu.dimension_semantics<arbitrary>], iteration_bounds = array<i64: 1, 1>, scalar_prefetch = 0 : i64, scratch_operands = 1 : i64, tpu.core_type = #tpu.core_type<tc>, window_params = [{transform_indices = @transform_0, window_bounds = array<i64: 2, 4, 256>}, {pipeline_mode = #tpu.pipeline_mode<synchronous>, transform_indices = @transform_1, window_bounds = array<i64: 4, 12>}, {pipeline_mode = #tpu.pipeline_mode<synchronous>, transform_indices = @transform_2, window_bounds = array<i64: 1, 12>}, {pipeline_mode = #tpu.pipeline_mode<synchronous>, transform_indices = @transform_3, window_bounds = array<i64: 1, 12>}, {pipeline_mode = #tpu.pipeline_mode<synchronous>, transform_indices = @transform_4, window_bounds = array<i64: 1, 12>}, {pipeline_mode = #tpu.pipeline_mode<synchronous>, transform_indices = @transform_5, window_bounds = array<i64: 12, 128>}, {pipeline_mode = #tpu.pipeline_mode<synchronous>, transform_indices = @transform_6, window_bounds = array<i64: 1, 128>}, {transform_indices = @transform_7, window_bounds = array<i64: 2, 128>}]} {
    %c0_i32 = arith.constant 0 : i32
    %0 = arith.cmpi eq, %arg1, %c0_i32 : i32
    %1 = arith.extui %0 : i1 to i32
    %c0_i32_0 = arith.constant 0 : i32
    %2 = arith.cmpi ne, %1, %c0_i32_0 : i32
    scf.if %2 {
      %cst_9 = arith.constant 0.000000e+00 : f32
      %14 = vector.broadcast %cst_9 : f32 to vector<2x4xf32>
      %c0_10 = arith.constant 0 : index
      %c0_11 = arith.constant 0 : index
      %15 = vector.load %arg10[%c0_10, %c0_11] : memref<2x4xf32, #tpu.memory_space<vmem>>, vector<2x4xf32>
      tpu.vector_store %arg10[%c0_10, %c0_11], %14 {strides = array<i32>} : memref<2x4xf32, #tpu.memory_space<vmem>>, vector<2x4xf32>,
    } else {
    }
    %c0 = arith.constant 0 : index
    %c0_1 = arith.constant 0 : index
    %c0_2 = arith.constant 0 : index
    %3 = vector.load %arg2[%c0, %c0_1, %c0_2] : memref<2x4x256xf32, #tpu.memory_space<vmem>>, vector<2x4x256xf32>
    %4 = vector.extract_strided_slice %3 {offsets = [0, 0, 0], sizes = [2, 4, 128], strides = [1, 1, 1]} : vector<2x4x256xf32> to vector<2x4x128xf32>
    %5 = vector.extract_strided_slice %3 {offsets = [0, 0, 128], sizes = [2, 4, 128], strides = [1, 1, 1]} : vector<2x4x256xf32> to vector<2x4x128xf32>
    %6 = arith.addf %4, %5 : vector<2x4x128xf32>
    %c0_3 = arith.constant 0 : index
    %c0_4 = arith.constant 0 : index
    %7 = vector.load %arg10[%c0_3, %c0_4] : memref<2x4xf32, #tpu.memory_space<vmem>>, vector<2x4xf32>
    %cst = arith.constant dense<0.000000e+00> : vector<2x4xf32>
    %8 = vector.multi_reduction <add>, %6, %cst [2] : vector<2x4x128xf32> to vector<2x4xf32>
    %9 = arith.addf %7, %8 : vector<2x4xf32>
    %c0_5 = arith.constant 0 : index
    %c0_6 = arith.constant 0 : index
    %10 = vector.load %arg10[%c0_5, %c0_6] : memref<2x4xf32, #tpu.memory_space<vmem>>, vector<2x4xf32>
    tpu.vector_store %arg10[%c0_5, %c0_6], %9 {strides = array<i32>} : memref<2x4xf32, #tpu.memory_space<vmem>>, vector<2x4xf32>,
    %c0_i32_7 = arith.constant 0 : i32
    %11 = arith.cmpi eq, %arg1, %c0_i32_7 : i32
    %12 = arith.extui %11 : i1 to i32
    %c0_i32_8 = arith.constant 0 : i32
    %13 = arith.cmpi ne, %12, %c0_i32_8 : i32
    scf.if %13 {
      %c0_9 = arith.constant 0 : index
      %c0_10 = arith.constant 0 : index
      %14 = vector.load %arg10[%c0_9, %c0_10] : memref<2x4xf32, #tpu.memory_space<vmem>>, vector<2x4xf32>
      %cst_11 = arith.constant 3.906250e-03 : f32
      %15 = vector.broadcast %cst_11 : f32 to vector<2x4xf32>
      %16 = arith.mulf %14, %15 : vector<2x4xf32>
      %c0_12 = arith.constant 0 : index
      %c0_13 = arith.constant 0 : index
      %17 = vector.load %arg3[%c0_12, %c0_13] : memref<4x12xf32, #tpu.memory_space<vmem>>, vector<4x12xf32>
      %cst_14 = arith.constant dense<0.000000e+00> : vector<2x12xf32>
      %18 = tpu.matmul %16, %17, %cst_14 {dimension_numbers = #tpu.dot_dimension_numbers<[1], [0], [0], [1], [0, 0, 1, 1], [], []>} : vector<2x4xf32>, vector<4x12xf32>, vector<2x12xf32> -> vector<2x12xf32>
      %c0_15 = arith.constant 0 : index
      %c0_16 = arith.constant 0 : index
      %19 = vector.load %arg4[%c0_15, %c0_16] : memref<1x12xf32, #tpu.memory_space<vmem>>, vector<1x12xf32>
      %20 = vector.broadcast %19 : vector<1x12xf32> to vector<2x12xf32>
      %21 = arith.addf %18, %20 : vector<2x12xf32>
      %cst_17 = arith.constant 5.000000e-01 : f32
      %22 = vector.broadcast %cst_17 : f32 to vector<2x12xf32>
      %23 = arith.mulf %22, %21 : vector<2x12xf32>
      %cst_18 = arith.constant 0.707106769 : f32
      %24 = vector.broadcast %cst_18 : f32 to vector<2x12xf32>
      %25 = arith.mulf %21, %24 : vector<2x12xf32>
      %26 = math.erf %25 : vector<2x12xf32>
      %cst_19 = arith.constant 1.000000e+00 : f32
      %27 = vector.broadcast %cst_19 : f32 to vector<2x12xf32>
      %28 = arith.addf %27, %26 : vector<2x12xf32>
      %29 = arith.mulf %23, %28 : vector<2x12xf32>
      %cst_20 = arith.constant dense<0.000000e+00> : vector<2xf32>
      %30 = vector.multi_reduction <add>, %29, %cst_20 [1] : vector<2x12xf32> to vector<2xf32>
      %31 = vector.shape_cast %30 : vector<2xf32> to vector<2x1xf32>
      %cst_21 = arith.constant 1.200000e+01 : f32
      %32 = vector.broadcast %cst_21 : f32 to vector<2x1xf32>
      %33 = arith.divf %31, %32 : vector<2x1xf32>
      %34 = vector.broadcast %33 : vector<2x1xf32> to vector<2x12xf32>
      %35 = arith.subf %29, %34 : vector<2x12xf32>
      %36 = vector.broadcast %33 : vector<2x1xf32> to vector<2x12xf32>
      %37 = arith.subf %29, %36 : vector<2x12xf32>
      %38 = arith.mulf %35, %37 : vector<2x12xf32>
      %cst_22 = arith.constant dense<0.000000e+00> : vector<2xf32>
      %39 = vector.multi_reduction <add>, %38, %cst_22 [1] : vector<2x12xf32> to vector<2xf32>
      %40 = vector.shape_cast %39 : vector<2xf32> to vector<2x1xf32>
      %cst_23 = arith.constant 1.200000e+01 : f32
      %41 = vector.broadcast %cst_23 : f32 to vector<2x1xf32>
      %42 = arith.divf %40, %41 : vector<2x1xf32>
      %43 = vector.broadcast %33 : vector<2x1xf32> to vector<2x12xf32>
      %44 = arith.subf %29, %43 : vector<2x12xf32>
      %cst_24 = arith.constant 9.99999997E-7 : f32
      %45 = vector.broadcast %cst_24 : f32 to vector<2x1xf32>
      %46 = arith.addf %42, %45 : vector<2x1xf32>
      %47 = math.rsqrt %46 : vector<2x1xf32>
      %48 = vector.broadcast %47 : vector<2x1xf32> to vector<2x12xf32>
      %49 = arith.mulf %44, %48 : vector<2x12xf32>
      %c0_25 = arith.constant 0 : index
      %c0_26 = arith.constant 0 : index
      %50 = vector.load %arg5[%c0_25, %c0_26] : memref<1x12xf32, #tpu.memory_space<vmem>>, vector<1x12xf32>
      %51 = vector.broadcast %50 : vector<1x12xf32> to vector<2x12xf32>
      %52 = arith.mulf %49, %51 : vector<2x12xf32>
      %c0_27 = arith.constant 0 : index
      %c0_28 = arith.constant 0 : index
      %53 = vector.load %arg6[%c0_27, %c0_28] : memref<1x12xf32, #tpu.memory_space<vmem>>, vector<1x12xf32>
      %54 = vector.broadcast %53 : vector<1x12xf32> to vector<2x12xf32>
      %55 = arith.addf %52, %54 : vector<2x12xf32>
      %c0_29 = arith.constant 0 : index
      %c0_30 = arith.constant 0 : index
      %56 = vector.load %arg7[%c0_29, %c0_30] : memref<12x128xf32, #tpu.memory_space<vmem>>, vector<12x128xf32>
      %cst_31 = arith.constant dense<0.000000e+00> : vector<2x128xf32>
      %57 = tpu.matmul %55, %56, %cst_31 {dimension_numbers = #tpu.dot_dimension_numbers<[1], [0], [0], [1], [0, 0, 1, 1], [], []>} : vector<2x12xf32>, vector<12x128xf32>, vector<2x128xf32> -> vector<2x128xf32>
      %c0_32 = arith.constant 0 : index
      %c0_33 = arith.constant 0 : index
      %58 = vector.load %arg8[%c0_32, %c0_33] : memref<1x128xf32, #tpu.memory_space<vmem>>, vector<1x128xf32>
      %59 = vector.broadcast %58 : vector<1x128xf32> to vector<2x128xf32>
      %60 = arith.addf %57, %59 : vector<2x128xf32>
      %c0_34 = arith.constant 0 : index
      %c0_35 = arith.constant 0 : index
      %61 = vector.load %arg9[%c0_34, %c0_35] : memref<2x128xf32, #tpu.memory_space<vmem>>, vector<2x128xf32>
      tpu.vector_store %arg9[%c0_34, %c0_35], %60 {strides = array<i32>} : memref<2x128xf32, #tpu.memory_space<vmem>>, vector<2x128xf32>,
    } else {
    }
    return
  }
  func.func @transform_0(%arg0: i32, %arg1: i32) -> (i32, i32, i32) {
    %c0_i32 = arith.constant 0 : i32
    %c0_i32_0 = arith.constant 0 : i32
    return %arg0, %c0_i32, %arg1 : i32, i32, i32
  }
  func.func @transform_1(%arg0: i32, %arg1: i32) -> (i32, i32) {
    %c0_i32 = arith.constant 0 : i32
    %c0_i32_0 = arith.constant 0 : i32
    %c0_i32_1 = arith.constant 0 : i32
    return %c0_i32, %c0_i32_0 : i32, i32
  }
  func.func @transform_2(%arg0: i32, %arg1: i32) -> (i32, i32) {
    %c0_i32 = arith.constant 0 : i32
    %c0_i32_0 = arith.constant 0 : i32
    %c0_i32_1 = arith.constant 0 : i32
    return %c0_i32, %c0_i32_0 : i32, i32
  }
  func.func @transform_3(%arg0: i32, %arg1: i32) -> (i32, i32) {
    %c0_i32 = arith.constant 0 : i32
    %c0_i32_0 = arith.constant 0 : i32
    %c0_i32_1 = arith.constant 0 : i32
    return %c0_i32, %c0_i32_0 : i32, i32
  }
  func.func @transform_4(%arg0: i32, %arg1: i32) -> (i32, i32) {
    %c0_i32 = arith.constant 0 : i32
    %c0_i32_0 = arith.constant 0 : i32
    %c0_i32_1 = arith.constant 0 : i32
    return %c0_i32, %c0_i32_0 : i32, i32
  }
  func.func @transform_5(%arg0: i32, %arg1: i32) -> (i32, i32) {
    %c0_i32 = arith.constant 0 : i32
    %c0_i32_0 = arith.constant 0 : i32
    %c0_i32_1 = arith.constant 0 : i32
    return %c0_i32, %c0_i32_0 : i32, i32
  }
  func.func @transform_6(%arg0: i32, %arg1: i32) -> (i32, i32) {
    %c0_i32 = arith.constant 0 : i32
    %c0_i32_0 = arith.constant 0 : i32
    %c0_i32_1 = arith.constant 0 : i32
    return %c0_i32, %c0_i32_0 : i32, i32
  }
  func.func @transform_7(%arg0: i32, %arg1: i32) -> (i32, i32) {
    %c0_i32 = arith.constant 0 : i32
    %c0_i32_0 = arith.constant 0 : i32
    return %arg0, %c0_i32 : i32, i32
  }
}

</mosaic_0001>

<llo_original>
// kernel: tpu_custom_call.1
$region0: #{tpu_custom_call.1}
  #allocation0 [shape = 'u32[]', space=smem, size = 0x4, offset = 0x4, fixed_abs, tag = 'smem constant byte address 0x4 - core index']
  #allocation1 [shape = 'u32[144,128]{1,0:T(1,128)}', space=vmem, size = 0x12000, scoped, tag = 'internal scratch']
  #allocation2 [shape = 'f32[2,4]{1,0:T(2,128)}', space=vmem, size = 0x400, scoped, tag = 'scratch operand']
  %s0 = inlined_call_operand.hbm [shape: f32[2,4,256], index: 0, kind: input, shape index: {}]
  %s1 = inlined_call_operand.hbm [shape: f32[4,12], index: 1, kind: input, shape index: {}]
  %s2 = inlined_call_operand.vmem [shape: f32[1,12], index: 2, kind: input, shape index: {}]
  %s3 = inlined_call_operand.vmem [shape: f32[1,12], index: 3, kind: input, shape index: {}]
  %s4 = inlined_call_operand.vmem [shape: f32[1,12], index: 4, kind: input, shape index: {}]
  %s5 = inlined_call_operand.hbm [shape: f32[12,128], index: 5, kind: input, shape index: {}]
  %s6 = inlined_call_operand.vmem [shape: f32[1,128], index: 6, kind: input, shape index: {}]
  %s7 = inlined_call_operand.hbm [shape: f32[2,128], index: 7, kind: output, shape index: {}]
  %s8 = sld [smem:[#allocation0]]
  $region58: #{tpu_custom_call.1} parent=0
    _
  %s10 = ssub.s32 1, %s8
  %s11 = scalar_select 0, %s10, %s8
  $region1: #{tpu_custom_call.1} parent=0
    #allocation3 [shape = 'u8[8192]{0}', space=vmem, size = 0x2000, scoped, tag = 'input window, operand 0, single buffered']
    #allocation4 [shape = 's32[1]{0}', space=sflag, size = 0x4, scoped, tag = 'scoped memory for tpu_custom_call.1']
    #allocation5 [shape = 's32[1]{0}', space=sflag, size = 0x4, scoped, tag = 'scoped memory for tpu_custom_call.1']
    #allocation6 [shape = 'u8[2048]{0}', space=vmem, size = 0x800, scoped, tag = 'input window, operand 1, single buffered']
    #allocation7 [shape = 's32[1]{0}', space=sflag, size = 0x4, scoped, tag = 'scoped memory for tpu_custom_call.1']
    #allocation8 [shape = 'u8[8192]{0}', space=vmem, size = 0x2000, scoped, tag = 'input window, operand 5, single buffered']
    #allocation9 [shape = 'u8[1024]{0}', space=vmem, size = 0x400, scoped, tag = 'output window, operand 0, single buffered']
    %12 = vsyncpa [#allocation4], 0
    %13 = vsyncpa [#allocation7], 0
    %14 = vsyncpa [#allocation5], 0
    // Predicated region
    $region2: #{tpu_custom_call.1} parent=1 // pred_check
      _
    $region3: #{tpu_custom_call.1} parent=1 // pred_check_branch
      %16 = sbr.rel (0) target = $region5
    $region4: #{tpu_custom_call.1} parent=1 // pred_region
      %s18 = ssub.s32 256, 256
      %19 = vsyncadd [#allocation4], %s18
      %s20 = sshll.u32 [#allocation3], 4
      %s21 = int_to_ptr.vmem [resolvable:$true] %s20
      %26 = dma.hbm_to_vmem [thread:$0]  %s0, 256, %s21, [#allocation4], 128, 128, 8
    $region5: #{tpu_custom_call.1} parent=1 // pred_fallthru
      _
    // Predicated region
    $region6: #{tpu_custom_call.1} parent=1 // pred_check
      _
    $region7: #{tpu_custom_call.1} parent=1 // pred_check_branch
      %28 = sbr.rel (0) target = $region9
    $region8: #{tpu_custom_call.1} parent=1 // pred_region
      %s30 = ssub.s32 64, 64
      %31 = vsyncadd [#allocation7], %s30
      %s33 = sshll.u32 [#allocation6], 4
      %s34 = int_to_ptr.vmem [resolvable:$true] %s33
      %36 = dma.hbm_to_vmem [thread:$0]  %s1, 64, %s34, [#allocation7]
    $region9: #{tpu_custom_call.1} parent=1 // pred_fallthru
      _
    // Predicated region
    $region10: #{tpu_custom_call.1} parent=1 // pred_check
      _
    $region11: #{tpu_custom_call.1} parent=1 // pred_check_branch
      %38 = sbr.rel (0) target = $region13
    $region12: #{tpu_custom_call.1} parent=1 // pred_region
      _
    $region13: #{tpu_custom_call.1} parent=1 // pred_fallthru
      _
    // Predicated region
    $region14: #{tpu_custom_call.1} parent=1 // pred_check
      _
    $region15: #{tpu_custom_call.1} parent=1 // pred_check_branch
      %40 = sbr.rel (0) target = $region17
    $region16: #{tpu_custom_call.1} parent=1 // pred_region
      _
    $region17: #{tpu_custom_call.1} parent=1 // pred_fallthru
      _
    // Predicated region
    $region18: #{tpu_custom_call.1} parent=1 // pred_check
      _
    $region19: #{tpu_custom_call.1} parent=1 // pred_check_branch
      %42 = sbr.rel (0) target = $region21
    $region20: #{tpu_custom_call.1} parent=1 // pred_region
      _
    $region21: #{tpu_custom_call.1} parent=1 // pred_fallthru
      _
    // Predicated region
    $region22: #{tpu_custom_call.1} parent=1 // pred_check
      _
    $region23: #{tpu_custom_call.1} parent=1 // pred_check_branch
      %44 = sbr.rel (0) target = $region25
    $region24: #{tpu_custom_call.1} parent=1 // pred_region
      %s46 = ssub.s32 256, 256
      %47 = vsyncadd [#allocation7], %s46
      %s48 = sshll.u32 [#allocation8], 4
      %s49 = int_to_ptr.vmem [resolvable:$true] %s48
      %54 = dma.hbm_to_vmem [thread:$0]  %s5, 256, %s49, [#allocation7], 128, 128, 8
    $region25: #{tpu_custom_call.1} parent=1 // pred_fallthru
      _
    // Predicated region
    $region26: #{tpu_custom_call.1} parent=1 // pred_check
      _
    $region27: #{tpu_custom_call.1} parent=1 // pred_check_branch
      %56 = sbr.rel (0) target = $region29
    $region28: #{tpu_custom_call.1} parent=1 // pred_region
      _
    $region29: #{tpu_custom_call.1} parent=1 // pred_fallthru
      _
    // Predicated region
    $region30: #{tpu_custom_call.1} parent=1 // pred_check
      _
    $region31: #{tpu_custom_call.1} parent=1 // pred_check_branch
      %58 = sbr.rel (0) target = $region33
    $region32: #{tpu_custom_call.1} parent=1 // pred_region
      %59 = dma.done [#allocation4], 256
    $region33: #{tpu_custom_call.1} parent=1 // pred_fallthru
      _
    // Predicated region
    $region34: #{tpu_custom_call.1} parent=1 // pred_check
      _
    $region35: #{tpu_custom_call.1} parent=1 // pred_check_branch
      %61 = sbr.rel (0) target = $region37
    $region36: #{tpu_custom_call.1} parent=1 // pred_region
      %62 = dma.done [#allocation7], 64
    $region37: #{tpu_custom_call.1} parent=1 // pred_fallthru
      _
    // Predicated region
    $region38: #{tpu_custom_call.1} parent=1 // pred_check
      _
    $region39: #{tpu_custom_call.1} parent=1 // pred_check_branch
      %64 = sbr.rel (0) target = $region41
    $region40: #{tpu_custom_call.1} parent=1 // pred_region
      %65 = dma.done [#allocation7], 256
    $region41: #{tpu_custom_call.1} parent=1 // pred_fallthru
      _
    %p66 = scmp.eq.s32.totalorder 0, 0
    // Predicated region
    $region42: #{tpu_custom_call.1} parent=1 // pred_check
      %p67 = pneg %p66
    $region43: #{tpu_custom_call.1} parent=1 // pred_check_branch
      %69 = sbr.rel (%p67) target = $region45
    $region44: #{tpu_custom_call.1} parent=1 // pred_region
      %vm70 = vcmask 25600
      %71 = vst.msk [vmem:[#allocation2] sm:$0x3] %vm70, 0.0
    $region45: #{tpu_custom_call.1} parent=1 // pred_fallthru
      _
    %v72 = vld [vmem:[#allocation3] sm:$0xff]
    %v73 = vld [vmem:[#allocation3 + $0x8] sm:$0xff]
    %v76 = vrot.slane %v72, 4
    %v77 = vrot.slane %v73, 4
    %v80 = vadd.f32 %v72, %v76
    %v81 = vadd.f32 %v73, %v77
    %v82 = vld [vmem:[#allocation2] sm:$0x3]
    %vm83 = vcmask 1043456
    %v84 = vsel %vm83, %v80, 0.0
    %85 = vadd.xlane.f32.xlu0 %v84
    %v86 = vpop.xlane.xlu0 %85
    %v87 = vsel %vm83, %v81, 0.0
    %88 = vadd.xlane.f32.xlu0 %v87
    %v89 = vpop.xlane.xlu0 %88
    %v92 = vlaneseq
    %v93 = vand.u32 %v92, 127
    %v94 = vlaneseq
    %v95 = vshrl.u32 %v94, 7
    %v96 = vsub.s32 %v93, %v95
    %v97 = vrot.slane %v86, %v96
    %v98 = vlaneseq
    %v99 = vshrl.u32 %v98, 7
    %v100 = vsub.s32 %v93, %v99
    %v101 = vrot.slane %v89, %v100
    %vm102 = vcmask 1041409
    %v103 = vsel %vm102, %v101, %v97
    %v105 = vadd.f32 %v82, %v103
    %vm106 = vcmask 25600
    %107 = vst.msk [vmem:[#allocation2] sm:$0x3] %vm106, %v105
    // Predicated region
    $region46: #{tpu_custom_call.1} parent=1 // pred_check
      %p108 = pneg %p66
    $region47: #{tpu_custom_call.1} parent=1 // pred_check_branch
      %110 = sbr.rel (%p108) target = $region49
    $region48: #{tpu_custom_call.1} parent=1 // pred_region
      %v111 = vld [vmem:[#allocation2] sm:$0x3]
      %v112 = vmul.f32 %v111, 0.00390625
      %v113 = vld [vmem:[#allocation6] sm:$0xf]
      %v114 = vld [vmem:[%s2] sm:$0x1]
      %v116 = vlaneseq
      %v117 = vshrl.u32 %v116, 7
      %v118 = vsub.s32 0, %v117
      %v119 = vrot.slane %v114, %v118
      %vm121 = vcmask 31744
      %v123 = vsel %vm121, %v112, 0
      %v126 = vsel %vm83, %v113, 0
      %128 = vmatprep.subr.mxu0 0.0
      %129 = vmatpush1.msra.mxu0 0.0
      %130 = vmatprep.subr.mxu0 0.0
      %131 = vmatpush1.msra.mxu0 0.0
      %132 = vmatprep.subr.mxu0 0.0
      %133 = vmatpush1.msra.mxu0 0.0
      %134 = vmatprep.subr.mxu0 0.0
      %135 = vmatpush1.msra.mxu0 0.0
      %136 = vmatprep.subr.mxu0 0.0
      %137 = vmatpush1.msra.mxu0 0.0
      %138 = vmatprep.subr.mxu0 0.0
      %139 = vmatpush1.msra.mxu0 0.0
      %140 = vmatprep.subr.mxu0 0.0
      %141 = vmatpush1.msra.mxu0 0.0
      %142 = vmatprep.subr.mxu0 0.0
      %143 = vmatpush1.msra.mxu0 0.0
      %144 = vmatprep.subr.mxu0 0.0
      %145 = vmatpush1.msra.mxu0 0.0
      %146 = vmatprep.subr.mxu0 0.0
      %147 = vmatpush1.msra.mxu0 0.0
      %148 = vmatprep.subr.mxu0 0.0
      %149 = vmatpush1.msra.mxu0 0.0
      %150 = vmatprep.subr.mxu0 0.0
      %151 = vmatpush1.msra.mxu0 0.0
      %152 = vmatprep.subr.mxu0 0.0
      %153 = vmatpush1.msra.mxu0 0.0
      %154 = vmatprep.subr.mxu0 0.0
      %155 = vmatpush1.msra.mxu0 0.0
      %156 = vmatprep.subr.mxu0 0.0
      %157 = vmatpush1.msra.mxu0 0.0
      %158 = vmatprep.subr.mxu0 0.0
      %159 = vmatpush1.msra.mxu0 %v126
      %160 = vmatprep.subr.mxu0 0.0
      %161 = vmatpush2.msra.mxu0 0.0
      %162 = vmatprep.subr.mxu0 0.0
      %163 = vmatpush2.msra.mxu0 0.0
      %164 = vmatprep.subr.mxu0 0.0
      %165 = vmatpush2.msra.mxu0 0.0
      %166 = vmatprep.subr.mxu0 0.0
      %167 = vmatpush2.msra.mxu0 0.0
      %168 = vmatprep.subr.mxu0 0.0
      %169 = vmatpush2.msra.mxu0 0.0
      %170 = vmatprep.subr.mxu0 0.0
      %171 = vmatpush2.msra.mxu0 0.0
      %172 = vmatprep.subr.mxu0 0.0
      %173 = vmatpush2.msra.mxu0 0.0
      %174 = vmatprep.subr.mxu0 0.0
      %175 = vmatpush2.msra.mxu0 0.0
      %176 = vmatprep.subr.mxu0 0.0
      %177 = vmatpush2.msra.mxu0 0.0
      %178 = vmatprep.subr.mxu0 0.0
      %179 = vmatpush2.msra.mxu0 0.0
      %180 = vmatprep.subr.mxu0 0.0
      %181 = vmatpush2.msra.mxu0 0.0
      %182 = vmatprep.subr.mxu0 0.0
      %183 = vmatpush2.msra.mxu0 0.0
      %184 = vmatprep.subr.mxu0 0.0
      %185 = vmatpush2.msra.mxu0 0.0
      %186 = vmatprep.subr.mxu0 0.0
      %187 = vmatpush2.msra.mxu0 0.0
      %188 = vmatprep.subr.mxu0 0.0
      %189 = vmatpush2.msra.mxu0 0.0
      %190 = vmatprep.subr.mxu0 0.0
      %191 = vmatpush2.msra.mxu0 0.0
      %192 = vmatprep.mubr.f32.mxu0 0.0
      %193 = vmatmul.mubr.f32.gmra.mxu0 %v123
      %v194 = vpop.f32.mrf.mxu0
      %v195 = vadd.f32 %v119, %v194
      %v196 = vpop.f32.mrf.mxu0
      %197 = vdwg.mxu0
      %v198 = vmul.f32 %v195, 0.5
      %v199 = vmul.f32 %v195, 0.70710677
      %v200 = verf.f32.pop %v199
      %v201 = vadd.f32 %v200, 1.0
      %v202 = vmul.f32 %v198, %v201
      %vm203 = vcmask 91136
      %v204 = vsel %vm203, %v202, 0.0
      %205 = vadd.xlane.f32.xlu0 %v204
      %v206 = vpop.xlane.xlu0 %205
      %v207 = vrcp.pop 12.0
      %v208 = vmul.f32 %v206, %v207
      %v209 = vsub.f32 %v202, %v208
      %v210 = vmul.f32 %v209, %v209
      %v211 = vsel %vm203, %v210, 0.0
      %212 = vadd.xlane.f32.xlu0 %v211
      %v213 = vpop.xlane.xlu0 %212
      %v214 = vmul.f32 %v213, %v207
      %v215 = vadd.f32 %v214, 1e-06
      %v216 = vrsqrt.pop %v215
      %v217 = vmul.f32 %v209, %v216
      %v218 = vld [vmem:[%s3] sm:$0x1]
      %v220 = vlaneseq
      %v221 = vshrl.u32 %v220, 7
      %v222 = vsub.s32 0, %v221
      %v223 = vrot.slane %v218, %v222
      %v225 = vmul.f32 %v217, %v223
      %v226 = vld [vmem:[%s4] sm:$0x1]
      %v228 = vlaneseq
      %v229 = vshrl.u32 %v228, 7
      %v230 = vsub.s32 0, %v229
      %v231 = vrot.slane %v226, %v230
      %v233 = vadd.f32 %v225, %v231
      %v234 = vld [vmem:[#allocation8] sm:$0xff]
      %v235 = vld [vmem:[#allocation8 + $0x8] sm:$0xf]
      %v236 = vld [vmem:[%s6] sm:$0x1]
      %v238 = vlaneseq
      %v239 = vshrl.u32 %v238, 7
      %v240 = vsub.s32 0, %v239
      %v241 = vrot.slane %v236, %v240
      %vm243 = vcmask 97280
      %v245 = vsel %vm243, %v233, 0
      %v248 = vsel %vm83, %v235, 0
      %250 = vmatprep.subr.mxu0 0.0
      %251 = vmatpush1.msra.mxu0 0.0
      %252 = vmatprep.subr.mxu0 0.0
      %253 = vmatpush1.msra.mxu0 0.0
      %254 = vmatprep.subr.mxu0 0.0
      %255 = vmatpush1.msra.mxu0 0.0
      %256 = vmatprep.subr.mxu0 0.0
      %257 = vmatpush1.msra.mxu0 0.0
      %258 = vmatprep.subr.mxu0 0.0
      %259 = vmatpush1.msra.mxu0 0.0
      %260 = vmatprep.subr.mxu0 0.0
      %261 = vmatpush1.msra.mxu0 0.0
      %262 = vmatprep.subr.mxu0 0.0
      %263 = vmatpush1.msra.mxu0 0.0
      %264 = vmatprep.subr.mxu0 0.0
      %265 = vmatpush1.msra.mxu0 0.0
      %266 = vmatprep.subr.mxu0 0.0
      %267 = vmatpush1.msra.mxu0 0.0
      %268 = vmatprep.subr.mxu0 0.0
      %269 = vmatpush1.msra.mxu0 0.0
      %270 = vmatprep.subr.mxu0 0.0
      %271 = vmatpush1.msra.mxu0 0.0
      %272 = vmatprep.subr.mxu0 0.0
      %273 = vmatpush1.msra.mxu0 0.0
      %274 = vmatprep.subr.mxu0 0.0
      %275 = vmatpush1.msra.mxu0 0.0
      %276 = vmatprep.subr.mxu0 0.0
      %277 = vmatpush1.msra.mxu0 0.0
      %278 = vmatprep.subr.mxu0 0.0
      %279 = vmatpush1.msra.mxu0 %v248
      %280 = vmatprep.subr.mxu0 0.0
      %281 = vmatpush1.msra.mxu0 %v234
      %282 = vmatprep.subr.mxu0 0.0
      %283 = vmatpush2.msra.mxu0 0.0
      %284 = vmatprep.subr.mxu0 0.0
      %285 = vmatpush2.msra.mxu0 0.0
      %286 = vmatprep.subr.mxu0 0.0
      %287 = vmatpush2.msra.mxu0 0.0
      %288 = vmatprep.subr.mxu0 0.0
      %289 = vmatpush2.msra.mxu0 0.0
      %290 = vmatprep.subr.mxu0 0.0
      %291 = vmatpush2.msra.mxu0 0.0
      %292 = vmatprep.subr.mxu0 0.0
      %293 = vmatpush2.msra.mxu0 0.0
      %294 = vmatprep.subr.mxu0 0.0
      %295 = vmatpush2.msra.mxu0 0.0
      %296 = vmatprep.subr.mxu0 0.0
      %297 = vmatpush2.msra.mxu0 0.0
      %298 = vmatprep.subr.mxu0 0.0
      %299 = vmatpush2.msra.mxu0 0.0
      %300 = vmatprep.subr.mxu0 0.0
      %301 = vmatpush2.msra.mxu0 0.0
      %302 = vmatprep.subr.mxu0 0.0
      %303 = vmatpush2.msra.mxu0 0.0
      %304 = vmatprep.subr.mxu0 0.0
      %305 = vmatpush2.msra.mxu0 0.0
      %306 = vmatprep.subr.mxu0 0.0
      %307 = vmatpush2.msra.mxu0 0.0
      %308 = vmatprep.subr.mxu0 0.0
      %309 = vmatpush2.msra.mxu0 0.0
      %310 = vmatprep.subr.mxu0 0.0
      %311 = vmatpush2.msra.mxu0 0.0
      %312 = vmatprep.subr.mxu0 0.0
      %313 = vmatpush2.msra.mxu0 0.0
      %314 = vmatprep.mubr.f32.mxu0 0.0
      %315 = vmatmul.mubr.f32.gmra.mxu0 %v245
      %v316 = vpop.f32.mrf.mxu0
      %v317 = vadd.f32 %v241, %v316
      %v318 = vpop.f32.mrf.mxu0
      %319 = vdwg.mxu0
      %320 = vst [vmem:[#allocation9] sm:$0x3] %v317
    $region49: #{tpu_custom_call.1} parent=1 // pred_fallthru
      _
    // Predicated region
    $region50: #{tpu_custom_call.1} parent=1 // pred_check
      _
    $region51: #{tpu_custom_call.1} parent=1 // pred_check_branch
      %322 = sbr.rel (0) target = $region53
    $region52: #{tpu_custom_call.1} parent=1 // pred_region
      %s324 = ssub.s32 32, 32
      %325 = vsyncadd [#allocation5], %s324
      %s327 = sshll.u32 [#allocation9], 4
      %s328 = int_to_ptr.vmem [resolvable:$true] %s327
      %330 = dma.vmem_to_hbm [thread:$0]  %s328, 32, %s7, [#allocation5]
    $region53: #{tpu_custom_call.1} parent=1 // pred_fallthru
      _
    // Predicated region
    $region54: #{tpu_custom_call.1} parent=1 // pred_check
      _
    $region55: #{tpu_custom_call.1} parent=1 // pred_check_branch
      %332 = sbr.rel (0) target = $region57
    $region56: #{tpu_custom_call.1} parent=1 // pred_region
      %333 = dma.done [#allocation5], 32
    $region57: #{tpu_custom_call.1} parent=1 // pred_fallthru
      _
    %334 = vsyncpa [#allocation4], 1
    %335 = vsyncpa [#allocation7], 1
    %336 = vsyncpa [#allocation5], 1

</llo_original>
